<compile_context>
chip_gen: v6e
topology: v6e:2x2x1
jax: 0.10.0
libtpu: 0.0.40
codegen_flags: <defaults>
</compile_context>

<pallas_src>
import jax
import jax.numpy as jnp
from jax.experimental import pallas as pl
from jax.experimental.pallas import tpu as pltpu


# Tile caps (multiples of the (8, 128) vreg tile). ~2 MiB f32 per block:
# double-buffered input + output stays well under every generation's VMEM.
_MAX_TILE_B = 256    # sublane axis
_MAX_TILE_N = 2048   # lane axis


def _copy_kernel(x_ref, o_ref):
    # Lane-dense, unmasked full-block copy; the reshape lives in the wrapper.
    o_ref[...] = x_ref[...]


def unflatten(x: jax.Array, block_size: int) -> jax.Array:
    """Pallas equivalent of UnFlatten(block_size)(x).

    Accepts a (B, N) tensor (or any rank; trailing dims are flattened, same as
    torch .view with a contiguous input) and returns (B, N/bs^2, bs, bs).
    """
    if x.ndim != 2:
        x = x.reshape(x.shape[0], -1)          # metadata only
    B, N = x.shape
    bs = block_size
    assert N % (bs * bs) == 0, "total elements must be divisible by block_size**2"
    C = N // (bs * bs)

    # Block shape: last dim either the full extent or a multiple of 128;
    # second-to-last either the full extent or a multiple of 8.
    tile_b = B if B <= _MAX_TILE_B else _MAX_TILE_B
    tile_n = N if N <= _MAX_TILE_N else _MAX_TILE_N
    grid = (pl.cdiv(B, tile_b), pl.cdiv(N, tile_n))

    itemsize = jnp.dtype(x.dtype).itemsize
    cost = pl.CostEstimate(
        flops=0,
        transcendentals=0,
        bytes_accessed=2 * B * N * itemsize,   # read + write, pure bandwidth
    )

    flat = pl.pallas_call(
        _copy_kernel,
        out_shape=jax.ShapeDtypeStruct((B, N), x.dtype),
        grid=grid,
        in_specs=[pl.BlockSpec((tile_b, tile_n), lambda i, j: (i, j))],
        out_specs=pl.BlockSpec((tile_b, tile_n), lambda i, j: (i, j)),
        compiler_params=pltpu.CompilerParams(
            dimension_semantics=("parallel", "parallel"),
        ),
        cost_estimate=cost,
    )(x)

    # Free metadata view to NCHW == torch .view(B, -1, bs, bs) semantics.
    # (In a real model, drop the kernel above and use this reshape directly.)
    return flat.reshape(B, C, bs, bs)


if __name__ == "__main__":
    # Deterministic small example consistent with the module:
    #   block_size = 8, batch = 2, channels = 4  ->  flat dim = 4 * 8 * 8 = 256
    block_size = 8
    B, C = 2, 4
    N = C * block_size * block_size

    key = jax.random.PRNGKey(0)
    x = jax.random.normal(key, (B, N), dtype=jnp.float32)

    y = unflatten(x, block_size)
    y = jax.block_until_ready(y)

    # Reference check against plain-JAX reshape (== torch .view semantics).
    y_ref = x.reshape(B, -1, block_size, block_size)
    assert y.shape == (B, C, block_size, block_size)
    assert y.dtype == x.dtype
    assert jnp.array_equal(y, y_ref), "Pallas UnFlatten mismatch vs reference"

    print("KERNEL_OK")
</pallas_src>

<mosaic_0001>
module attributes {stable_mosaic.version = 11 : i64} {
  func.func @_copy_kernel(%arg0: i32, %arg1: i32, %arg2: memref<2x256xf32, #tpu.memory_space<vmem>>, %arg3: memref<2x256xf32, #tpu.memory_space<vmem>>) attributes {dimension_semantics = [#tpu.dimension_semantics<parallel>, #tpu.dimension_semantics<parallel>], iteration_bounds = array<i64: 1, 1>, scalar_prefetch = 0 : i64, scratch_operands = 0 : i64, tpu.core_type = #tpu.core_type<tc>, window_params = [{transform_indices = @transform_0, window_bounds = array<i64: 2, 256>}, {transform_indices = @transform_1, window_bounds = array<i64: 2, 256>}]} {
    %c0 = arith.constant 0 : index
    %c0_0 = arith.constant 0 : index
    %0 = vector.load %arg2[%c0, %c0_0] : memref<2x256xf32, #tpu.memory_space<vmem>>, vector<2x256xf32>
    %c0_1 = arith.constant 0 : index
    %c0_2 = arith.constant 0 : index
    %1 = vector.load %arg3[%c0_1, %c0_2] : memref<2x256xf32, #tpu.memory_space<vmem>>, vector<2x256xf32>
    tpu.vector_store %arg3[%c0_1, %c0_2], %0 {strides = array<i32>} : memref<2x256xf32, #tpu.memory_space<vmem>>, vector<2x256xf32>,
    return
  }
  func.func @transform_0(%arg0: i32, %arg1: i32) -> (i32, i32) {
    %c0_i32 = arith.constant 0 : i32
    return %arg0, %arg1 : i32, i32
  }
  func.func @transform_1(%arg0: i32, %arg1: i32) -> (i32, i32) {
    %c0_i32 = arith.constant 0 : i32
    return %arg0, %arg1 : i32, i32
  }
}

</mosaic_0001>

<llo_original>
// kernel: tpu_custom_call.1
$region0: #{tpu_custom_call.1}
  #allocation0 [shape = 'u32[]', space=smem, size = 0x4, offset = 0x4, fixed_abs, tag = 'smem constant byte address 0x4 - core index']
  #allocation1 [shape = 'u32[144,128]{1,0:T(1,128)}', space=vmem, size = 0x12000, scoped, tag = 'internal scratch']
  %s0 = inlined_call_operand.hbm [shape: f32[2,256], index: 0, kind: input, shape index: {}]
  %s1 = inlined_call_operand.hbm [shape: f32[2,256], index: 1, kind: output, shape index: {}]
  %s2 = sld [smem:[#allocation0]]
  $region18: #{tpu_custom_call.1} parent=0
    _
  %s4 = ssub.s32 1, %s2
  %s5 = scalar_select 0, %s4, %s2
  $region1: #{tpu_custom_call.1} parent=0
    #allocation2 [shape = 'u8[2048]{0}', space=vmem, size = 0x800, scoped, tag = 'input window, operand 0, single buffered']
    #allocation3 [shape = 's32[1]{0}', space=sflag, size = 0x4, scoped, tag = 'scoped memory for tpu_custom_call.1']
    #allocation4 [shape = 's32[1]{0}', space=sflag, size = 0x4, scoped, tag = 'scoped memory for tpu_custom_call.1']
    #allocation5 [shape = 'u8[2048]{0}', space=vmem, size = 0x800, scoped, tag = 'output window, operand 0, single buffered']
    %6 = vsyncpa [#allocation3], 0
    %7 = vsyncpa [#allocation4], 0
    // Predicated region
    $region2: #{tpu_custom_call.1} parent=1 // pred_check
      _
    $region3: #{tpu_custom_call.1} parent=1 // pred_check_branch
      %9 = sbr.rel (0) target = $region5
    $region4: #{tpu_custom_call.1} parent=1 // pred_region
      %s11 = ssub.s32 64, 64
      %12 = vsyncadd [#allocation3], %s11
      %s14 = sshll.u32 [#allocation2], 4
      %s15 = int_to_ptr.vmem [resolvable:$true] %s14
      %17 = dma.hbm_to_vmem [thread:$0]  %s0, 64, %s15, [#allocation3]
    $region5: #{tpu_custom_call.1} parent=1 // pred_fallthru
      _
    // Predicated region
    $region6: #{tpu_custom_call.1} parent=1 // pred_check
      _
    $region7: #{tpu_custom_call.1} parent=1 // pred_check_branch
      %19 = sbr.rel (0) target = $region9
    $region8: #{tpu_custom_call.1} parent=1 // pred_region
      %20 = dma.done [#allocation3], 64
    $region9: #{tpu_custom_call.1} parent=1 // pred_fallthru
      _
    %v21 = vld [vmem:[#allocation2] sm:$0xf]
    %22 = vst [vmem:[#allocation5] sm:$0xf] %v21
    // Predicated region
    $region10: #{tpu_custom_call.1} parent=1 // pred_check
      _
    $region11: #{tpu_custom_call.1} parent=1 // pred_check_branch
      %24 = sbr.rel (0) target = $region13
    $region12: #{tpu_custom_call.1} parent=1 // pred_region
      %s26 = ssub.s32 64, 64
      %27 = vsyncadd [#allocation4], %s26
      %s29 = sshll.u32 [#allocation5], 4
      %s30 = int_to_ptr.vmem [resolvable:$true] %s29
      %32 = dma.vmem_to_hbm [thread:$0]  %s30, 64, %s1, [#allocation4]
    $region13: #{tpu_custom_call.1} parent=1 // pred_fallthru
      _
    // Predicated region
    $region14: #{tpu_custom_call.1} parent=1 // pred_check
      _
    $region15: #{tpu_custom_call.1} parent=1 // pred_check_branch
      %34 = sbr.rel (0) target = $region17
    $region16: #{tpu_custom_call.1} parent=1 // pred_region
      %35 = dma.done [#allocation4], 64
    $region17: #{tpu_custom_call.1} parent=1 // pred_fallthru
      _
    %36 = vsyncpa [#allocation3], 1
    %37 = vsyncpa [#allocation4], 1

</llo_original>
